<compile_context>
chip_gen: v7x
topology: tpu7x:2x2x1
jax: 0.10.0
libtpu: 0.0.40
codegen_flags: <defaults>
</compile_context>

<pallas_src>
import jax
import jax.numpy as jnp
from jax.experimental import pallas as pl
from jax.experimental.pallas import tpu as pltpu


def _round_up(x, m):
    return (x + m - 1) // m * m


def _linear_relu_kernel(x_ref, w_ref, b_ref, o_ref, acc_ref):
    """One (batch-tile, N-tile) block of the wrapped module (Linear + ReLU).

    grid = (batch tiles, N tiles, K tiles); K is the reduction axis (last,
    "arbitrary") and the f32 accumulator lives in VMEM scratch.

    x_ref: (tile_b, tile_k) f32     w_ref: (tile_k, tile_n) bf16
    b_ref: (1, tile_n) f32          o_ref: (tile_b, tile_n) out dtype
    acc_ref: (tile_b, tile_n) f32
    """
    k = pl.program_id(2)

    @pl.when(k == 0)
    def _():
        acc_ref[...] = jnp.zeros_like(acc_ref)

    # In-kernel bf16 cast of the x tile (hides under the MXU); w arrives
    # pre-cast bf16 from the wrapper (small, re-fetched per batch tile, so the
    # narrow copy pays for itself).  f32 accumulate on the MXU.
    acc_ref[...] += jnp.dot(
        x_ref[...].astype(jnp.bfloat16),
        w_ref[...],
        preferred_element_type=jnp.float32,
    )

    @pl.when(k == pl.num_programs(2) - 1)
    def _():
        # Single-pass f32 epilogue: bias add + ReLU in one VPU expression,
        # stored lane-dense in the caller's dtype.
        o_ref[...] = jnp.maximum(acc_ref[...] + b_ref[...], 0.0).astype(o_ref.dtype)


def data_parallel_forward(x, w, b, *, num_devices=1):
    """Scatter x along batch, run Linear+ReLU per shard, gather the outputs.

    `num_devices` is kept for API parity with DataParallelThreading but does
    NOT drive the tiling: the result is independent of the device count, and
    tile sizes are chosen from the per-generation VMEM budget instead.
    """
    del num_devices  # parallelism plumbing only; output is independent of it.

    batch, in_features = x.shape
    k_dim, out_features = w.shape
    assert k_dim == in_features
    out_dtype = x.dtype

    # ---- per-generation VMEM budget --------------------------------------
    # v5e/v6e: 128 MiB physical, v7x: 64 MiB per TensorCore.  Budget tiles to
    # ~60% of physical so double-buffered x/out + weight + accumulator always
    # fit with headroom.
    try:
        phys_vmem = int(pltpu.get_tpu_info().vmem_capacity_bytes)
    except Exception:
        phys_vmem = 64 << 20  # conservative floor (v7x)
    budget = int(phys_vmem * 0.6)

    # ---- K / N tiles -------------------------------------------------------
    # N tiles: lane-dense multiples of 128 (256 preferred -> matches the
    # 2x256x256 MXU on v6e/v7x).  K tiles: full K when small, otherwise a
    # 128-multiple reduction tile accumulated across the trailing grid axis.
    tile_n = out_features
    for cand in (512, 256, 128):
        if out_features > cand and out_features % cand == 0:
            tile_n = cand
            break
    tile_k = in_features
    for cand in (512, 256, 128):
        if in_features > cand and in_features % cand == 0:
            tile_k = cand
            break
    # TODO(synk): K=32 fills only 32/256 of the MXU contraction dim; padding K
    # to 128 with zero weight rows (exact) would raise MXU fill for real use.

    # ---- batch tile from the VMEM budget ----------------------------------
    # Per-step working set (bytes): x double-buffered f32, out double-buffered
    # f32, f32 accumulator, bf16 weight tile, f32 bias tile.
    fixed = 2 * tile_k * tile_n * 2 + 2 * tile_n * 4
    per_row = 2 * tile_k * 4 + 2 * tile_n * 4 + tile_n * 4
    cap_rows = max(16, (budget - fixed) // per_row)
    cap_b = max(16, min((cap_rows // 16) * 16, 1024))

    if batch < 32:
        # Trivially small batch: single full-batch tile, no padding (splitting
        # would only add the ~0.35 us/step pipeline overhead).
        tile_b = batch
        padded_b = batch
    else:
        padded_b = _round_up(batch, 16)  # bf16 packs 16 rows per vreg group
        # At least two batch tiles so the "parallel" axis can shard across
        # v7x's two TensorCores (no-op on v5e/v6e).
        cap_b = min(cap_b, max(16, ((padded_b // 2) // 16) * 16))
        # Largest multiple-of-16 tile that divides padded_b: the last tile is
        # never ragged, so no extra pad/slice HBM round-trip beyond the
        # minimal 16-row alignment.
        tile_b = min(cap_b, padded_b)
        while padded_b % tile_b != 0:
            tile_b -= 16

    grid_b = padded_b // tile_b
    grid_n = out_features // tile_n
    grid_k = in_features // tile_k

    if padded_b != batch:
        x = jnp.pad(x, ((0, padded_b - batch), (0, 0)))

    # Operands: x stays f32 (cast in-kernel); w pre-cast bf16; bias f32, 2-D.
    w_bf = w.astype(jnp.bfloat16)
    b2d = b.reshape(1, out_features).astype(jnp.float32)

    # Grid-constant blocks don't need double buffers; single-buffer them when
    # they are actually resident across more than one grid step.
    def _spec(shape, index_map, single_buffer):
        if single_buffer:
            return pl.BlockSpec(shape, index_map, pipeline_mode=pl.Buffered(1))
        return pl.BlockSpec(shape, index_map)

    n_steps = grid_b * grid_n * grid_k
    w_single = (grid_n == 1 and grid_k == 1 and n_steps > 1)
    b_single = (grid_n == 1 and n_steps > 1)

    # Only raise vmem_limit_bytes when the working set exceeds the smallest
    # scoped default (16 MiB on v5e); cap at 75% of physical (48 MiB on v7x).
    ws = fixed + tile_b * per_row
    compiler_kwargs = dict(
        dimension_semantics=("parallel", "parallel", "arbitrary"),
    )
    if int(ws * 1.5) > (16 << 20):
        compiler_kwargs["vmem_limit_bytes"] = min(
            int(phys_vmem * 0.75), max(32 << 20, int(ws * 1.5)))

    out = pl.pallas_call(
        _linear_relu_kernel,
        out_shape=jax.ShapeDtypeStruct((padded_b, out_features), out_dtype),
        grid_spec=pltpu.PrefetchScalarGridSpec(
            num_scalar_prefetch=0,
            grid=(grid_b, grid_n, grid_k),              # reduction (K) last
            in_specs=[
                # scatter: each (i, k) step sees one batch x K tile (f32)
                pl.BlockSpec((tile_b, tile_k), lambda i, j, k: (i, k)),
                # replicated weight tile (bf16)
                _spec((tile_k, tile_n), lambda i, j, k: (k, j), w_single),
                # replicated bias tile (f32)
                _spec((1, tile_n), lambda i, j, k: (0, j), b_single),
            ],
            # gather: output tiles written back in batch order, lane-dense N
            out_specs=pl.BlockSpec((tile_b, tile_n), lambda i, j, k: (i, j)),
            scratch_shapes=[pltpu.VMEM((tile_b, tile_n), jnp.float32)],
        ),
        compiler_params=pltpu.CompilerParams(**compiler_kwargs),
    )(x, w_bf, b2d)

    return out[:batch] if padded_b != batch else out


if __name__ == "__main__":
    key = jax.random.PRNGKey(0)
    k_x, k_w, k_b = jax.random.split(key, 3)

    batch = 16
    in_features = 32
    out_features = 128          # multiple of 128 -> lane-dense output stores
    num_devices = 2             # simulated "devices" the batch is scattered over

    x = jax.random.normal(k_x, (batch, in_features), dtype=jnp.float32)
    # deterministic parameter init for the wrapped module (Linear + ReLU)
    w = jax.random.normal(k_w, (in_features, out_features), dtype=jnp.float32) * 0.05
    b = jax.random.normal(k_b, (out_features,), dtype=jnp.float32) * 0.05

    out = data_parallel_forward(x, w, b, num_devices=num_devices)
    out = jax.block_until_ready(out)

    # reference: wrapped module on the full (gathered) batch with the same
    # bf16-operand / f32-accumulate contract as the kernel.
    ref = jnp.maximum(
        jnp.dot(x.astype(jnp.bfloat16), w.astype(jnp.bfloat16),
                preferred_element_type=jnp.float32) + b[None, :],
        0.0,
    ).astype(x.dtype)

    assert out.shape == (batch, out_features)
    assert jnp.allclose(out, ref, atol=1e-3, rtol=1e-3)

    print("KERNEL_OK")
</pallas_src>

<mosaic_0001>
module attributes {stable_mosaic.version = 11 : i64} {
  func.func @_linear_relu_kernel(%arg0: i32, %arg1: i32, %arg2: i32, %arg3: memref<16x32xf32, #tpu.memory_space<vmem>>, %arg4: memref<32x128xbf16, #tpu.memory_space<vmem>>, %arg5: memref<1x128xf32, #tpu.memory_space<vmem>>, %arg6: memref<16x128xf32, #tpu.memory_space<vmem>>, %arg7: memref<16x128xf32, #tpu.memory_space<vmem>>) attributes {dimension_semantics = [#tpu.dimension_semantics<parallel>, #tpu.dimension_semantics<parallel>, #tpu.dimension_semantics<arbitrary>], iteration_bounds = array<i64: 1, 1, 1>, scalar_prefetch = 0 : i64, scratch_operands = 1 : i64, tpu.core_type = #tpu.core_type<tc>, window_params = [{transform_indices = @transform_0, window_bounds = array<i64: 16, 32>}, {transform_indices = @transform_1, window_bounds = array<i64: 32, 128>}, {transform_indices = @transform_2, window_bounds = array<i64: 1, 128>}, {transform_indices = @transform_3, window_bounds = array<i64: 16, 128>}]} {
    %c0_i32 = arith.constant 0 : i32
    %0 = arith.cmpi eq, %arg2, %c0_i32 : i32
    %1 = arith.extui %0 : i1 to i32
    %c0_i32_0 = arith.constant 0 : i32
    %2 = arith.cmpi ne, %1, %c0_i32_0 : i32
    scf.if %2 {
      %cst_10 = arith.constant 0.000000e+00 : f32
      %13 = vector.broadcast %cst_10 : f32 to vector<16x128xf32>
      %c0_11 = arith.constant 0 : index
      %c0_12 = arith.constant 0 : index
      %14 = vector.load %arg7[%c0_11, %c0_12] : memref<16x128xf32, #tpu.memory_space<vmem>>, vector<16x128xf32>
      tpu.vector_store %arg7[%c0_11, %c0_12], %13 {strides = array<i32>} : memref<16x128xf32, #tpu.memory_space<vmem>>, vector<16x128xf32>,
    } else {
    }
    %c0 = arith.constant 0 : index
    %c0_1 = arith.constant 0 : index
    %3 = vector.load %arg7[%c0, %c0_1] : memref<16x128xf32, #tpu.memory_space<vmem>>, vector<16x128xf32>
    %c0_2 = arith.constant 0 : index
    %c0_3 = arith.constant 0 : index
    %4 = vector.load %arg3[%c0_2, %c0_3] : memref<16x32xf32, #tpu.memory_space<vmem>>, vector<16x32xf32>
    %5 = arith.truncf %4 : vector<16x32xf32> to vector<16x32xbf16>
    %c0_4 = arith.constant 0 : index
    %c0_5 = arith.constant 0 : index
    %6 = vector.load %arg4[%c0_4, %c0_5] : memref<32x128xbf16, #tpu.memory_space<vmem>>, vector<32x128xbf16>
    %cst = arith.constant dense<0.000000e+00> : vector<16x128xf32>
    %7 = tpu.matmul %5, %6, %cst {dimension_numbers = #tpu.dot_dimension_numbers<[1], [0], [0], [1], [0, 0, 1, 1], [], []>} : vector<16x32xbf16>, vector<32x128xbf16>, vector<16x128xf32> -> vector<16x128xf32>
    %8 = arith.addf %3, %7 : vector<16x128xf32>
    %c0_6 = arith.constant 0 : index
    %c0_7 = arith.constant 0 : index
    %9 = vector.load %arg7[%c0_6, %c0_7] : memref<16x128xf32, #tpu.memory_space<vmem>>, vector<16x128xf32>
    tpu.vector_store %arg7[%c0_6, %c0_7], %8 {strides = array<i32>} : memref<16x128xf32, #tpu.memory_space<vmem>>, vector<16x128xf32>,
    %c0_i32_8 = arith.constant 0 : i32
    %10 = arith.cmpi eq, %arg2, %c0_i32_8 : i32
    %11 = arith.extui %10 : i1 to i32
    %c0_i32_9 = arith.constant 0 : i32
    %12 = arith.cmpi ne, %11, %c0_i32_9 : i32
    scf.if %12 {
      %c0_10 = arith.constant 0 : index
      %c0_11 = arith.constant 0 : index
      %13 = vector.load %arg7[%c0_10, %c0_11] : memref<16x128xf32, #tpu.memory_space<vmem>>, vector<16x128xf32>
      %c0_12 = arith.constant 0 : index
      %c0_13 = arith.constant 0 : index
      %14 = vector.load %arg5[%c0_12, %c0_13] : memref<1x128xf32, #tpu.memory_space<vmem>>, vector<1x128xf32>
      %15 = vector.broadcast %14 : vector<1x128xf32> to vector<16x128xf32>
      %16 = arith.addf %13, %15 : vector<16x128xf32>
      %cst_14 = arith.constant 0.000000e+00 : f32
      %17 = vector.broadcast %cst_14 : f32 to vector<16x128xf32>
      %18 = arith.maximumf %16, %17 : vector<16x128xf32>
      %c0_15 = arith.constant 0 : index
      %c0_16 = arith.constant 0 : index
      %19 = vector.load %arg6[%c0_15, %c0_16] : memref<16x128xf32, #tpu.memory_space<vmem>>, vector<16x128xf32>
      tpu.vector_store %arg6[%c0_15, %c0_16], %18 {strides = array<i32>} : memref<16x128xf32, #tpu.memory_space<vmem>>, vector<16x128xf32>,
    } else {
    }
    return
  }
  func.func @transform_0(%arg0: i32, %arg1: i32, %arg2: i32) -> (i32, i32) {
    %c0_i32 = arith.constant 0 : i32
    return %arg0, %arg2 : i32, i32
  }
  func.func @transform_1(%arg0: i32, %arg1: i32, %arg2: i32) -> (i32, i32) {
    %c0_i32 = arith.constant 0 : i32
    return %arg2, %arg1 : i32, i32
  }
  func.func @transform_2(%arg0: i32, %arg1: i32, %arg2: i32) -> (i32, i32) {
    %c0_i32 = arith.constant 0 : i32
    %c0_i32_0 = arith.constant 0 : i32
    return %c0_i32, %arg1 : i32, i32
  }
  func.func @transform_3(%arg0: i32, %arg1: i32, %arg2: i32) -> (i32, i32) {
    %c0_i32 = arith.constant 0 : i32
    return %arg0, %arg1 : i32, i32
  }
}

</mosaic_0001>

<llo_original>
// kernel: tpu_custom_call.1
$region0: #{tpu_custom_call.1}
  #allocation0 [shape = 'u32[]', space=smem, size = 0x4, offset = 0x4, fixed_abs, tag = 'smem constant byte address 0x4 - core index']
  #allocation1 [shape = 'u32[144,128]{1,0:T(1,128)}', space=vmem, size = 0x12000, scoped, tag = 'internal scratch']
  #allocation2 [shape = 'f32[16,128]{1,0:T(8,128)}', space=vmem, size = 0x2000, scoped, tag = 'scratch operand']
  %s0 = inlined_call_operand.hbm [shape: f32[16,32], index: 0, kind: input, shape index: {}]
  %s1 = inlined_call_operand.hbm [shape: bf16[32,128], index: 1, kind: input, shape index: {}]
  %s2 = inlined_call_operand.vmem [shape: f32[1,128], index: 2, kind: input, shape index: {}]
  %s3 = inlined_call_operand.hbm [shape: f32[16,128], index: 3, kind: output, shape index: {}]
  %s4 = sld [smem:[#allocation0]]
  $region38: #{tpu_custom_call.1} parent=0
    _
  %s6 = ssub.s32 1, %s4
  %s7 = scalar_select 0, %s6, %s4
  $region1: #{tpu_custom_call.1} parent=0
    #allocation3 [shape = 'u8[8192]{0}', space=vmem, size = 0x2000, scoped, tag = 'input window, operand 0, single buffered']
    #allocation4 [shape = 's32[1]{0}', space=sflag, size = 0x4, scoped, tag = 'scoped memory for tpu_custom_call.1']
    #allocation5 [shape = 's32[1]{0}', space=sflag, size = 0x4, scoped, tag = 'scoped memory for tpu_custom_call.1']
    #allocation6 [shape = 'u8[8192]{0}', space=vmem, size = 0x2000, scoped, tag = 'input window, operand 1, single buffered']
    #allocation7 [shape = 's32[1]{0}', space=sflag, size = 0x4, scoped, tag = 'scoped memory for tpu_custom_call.1']
    #allocation8 [shape = 'u8[8192]{0}', space=vmem, size = 0x2000, scoped, tag = 'output window, operand 0, single buffered']
    %8 = vsyncpa [#allocation4], 0
    %9 = vsyncpa [#allocation7], 0
    %10 = vsyncpa [#allocation5], 0
    // Predicated region
    $region2: #{tpu_custom_call.1} parent=1 // pred_check
      _
    $region3: #{tpu_custom_call.1} parent=1 // pred_check_branch
      %12 = sbr.rel (0) target = $region5
    $region4: #{tpu_custom_call.1} parent=1 // pred_region
      %s14 = ssub.s32 256, 256
      %15 = vsyncadd [#allocation4], %s14
      %s16 = sshll.u32 [#allocation3], 4
      %s17 = int_to_ptr.vmem [resolvable:$true] %s16
      %22 = dma.hbm_to_vmem [thread:$0]  %s0, 256, %s17, [#allocation4], 128, 128, 8
    $region5: #{tpu_custom_call.1} parent=1 // pred_fallthru
      _
    // Predicated region
    $region6: #{tpu_custom_call.1} parent=1 // pred_check
      _
    $region7: #{tpu_custom_call.1} parent=1 // pred_check_branch
      %24 = sbr.rel (0) target = $region9
    $region8: #{tpu_custom_call.1} parent=1 // pred_region
      %s26 = ssub.s32 256, 256
      %27 = vsyncadd [#allocation7], %s26
      %s28 = sshll.u32 [#allocation6], 4
      %s29 = int_to_ptr.vmem [resolvable:$true] %s28
      %34 = dma.hbm_to_vmem [thread:$0]  %s1, 256, %s29, [#allocation7], 64, 64, 4
    $region9: #{tpu_custom_call.1} parent=1 // pred_fallthru
      _
    // Predicated region
    $region10: #{tpu_custom_call.1} parent=1 // pred_check
      _
    $region11: #{tpu_custom_call.1} parent=1 // pred_check_branch
      %36 = sbr.rel (0) target = $region13
    $region12: #{tpu_custom_call.1} parent=1 // pred_region
      _
    $region13: #{tpu_custom_call.1} parent=1 // pred_fallthru
      _
    // Predicated region
    $region14: #{tpu_custom_call.1} parent=1 // pred_check
      _
    $region15: #{tpu_custom_call.1} parent=1 // pred_check_branch
      %38 = sbr.rel (0) target = $region17
    $region16: #{tpu_custom_call.1} parent=1 // pred_region
      %39 = dma.done [#allocation4], 256
    $region17: #{tpu_custom_call.1} parent=1 // pred_fallthru
      _
    // Predicated region
    $region18: #{tpu_custom_call.1} parent=1 // pred_check
      _
    $region19: #{tpu_custom_call.1} parent=1 // pred_check_branch
      %41 = sbr.rel (0) target = $region21
    $region20: #{tpu_custom_call.1} parent=1 // pred_region
      %42 = dma.done [#allocation7], 256
    $region21: #{tpu_custom_call.1} parent=1 // pred_fallthru
      _
    %p44 = scmp.eq.s32.totalorder 0, 0
    // Predicated region
    $region22: #{tpu_custom_call.1} parent=1 // pred_check
      %p45 = pneg %p44
    $region23: #{tpu_custom_call.1} parent=1 // pred_check_branch
      %47 = sbr.rel (%p45) target = $region25
    $region24: #{tpu_custom_call.1} parent=1 // pred_region
      %48 = vst [vmem:[#allocation2] sm:$0xff] 0.0
      %49 = vst [vmem:[#allocation2 + $0x8] sm:$0xff] 0.0
    $region25: #{tpu_custom_call.1} parent=1 // pred_fallthru
      _
    %v50 = vld [vmem:[#allocation2] sm:$0xff]
    %v51 = vld [vmem:[#allocation2 + $0x8] sm:$0xff]
    %v52 = vld [vmem:[#allocation3] sm:$0xff]
    %v53 = vld [vmem:[#allocation3 + $0x8] sm:$0xff]
    %v54 = vpack.c.bf16 %v53, %v52
    %v55 = vld [vmem:[#allocation6] sm:$0xf]
    %v56 = vld [vmem:[#allocation6 + $0x4] sm:$0xf]
    %v57 = vld [vmem:[#allocation6 + $0x8] sm:$0xf]
    %v58 = vld [vmem:[#allocation6 + $0xc] sm:$0xf]
    %v63 = vunpack.c.l.b16 %v55
    %v64 = vunpack.c.l.b16 %v56
    %v65 = vunpack.c.l.b16 %v57
    %v66 = vunpack.c.l.b16 %v58
    %v67 = vpack.c.b16 %v64, %v63
    %v68 = vpack.c.b16 %v66, %v65
    %vm71 = vcmask 261120
    %v73 = vsel %vm71, %v54, 0
    %75 = vmatprep.subr.bf16.mxu0 0
    %76 = vmatpush1.bf16.msra.mxu0 %v67
    %77 = vmatprep.subr.bf16.mxu0 0
    %78 = vmatpush1.bf16.msra.mxu0 %v68
    %79 = vmatprep.subr.bf16.mxu0 0
    %80 = vmatpush1.bf16.msra.mxu0 0
    %81 = vmatprep.subr.bf16.mxu0 0
    %82 = vmatpush1.bf16.msra.mxu0 0
    %83 = vmatprep.subr.bf16.mxu0 0
    %84 = vmatpush1.bf16.msra.mxu0 0
    %85 = vmatprep.subr.bf16.mxu0 0
    %86 = vmatpush1.bf16.msra.mxu0 0
    %87 = vmatprep.subr.bf16.mxu0 0
    %88 = vmatpush1.bf16.msra.mxu0 0
    %89 = vmatprep.subr.bf16.mxu0 0
    %90 = vmatpush1.bf16.msra.mxu0 0
    %91 = vmatprep.subr.bf16.mxu0 0
    %92 = vmatpush1.bf16.msra.mxu0 0
    %93 = vmatprep.subr.bf16.mxu0 0
    %94 = vmatpush1.bf16.msra.mxu0 0
    %95 = vmatprep.subr.bf16.mxu0 0
    %96 = vmatpush1.bf16.msra.mxu0 0
    %97 = vmatprep.subr.bf16.mxu0 0
    %98 = vmatpush1.bf16.msra.mxu0 0
    %99 = vmatprep.subr.bf16.mxu0 0
    %100 = vmatpush1.bf16.msra.mxu0 0
    %101 = vmatprep.subr.bf16.mxu0 0
    %102 = vmatpush1.bf16.msra.mxu0 0
    %103 = vmatprep.subr.bf16.mxu0 0
    %104 = vmatpush1.bf16.msra.mxu0 0
    %105 = vmatprep.subr.bf16.mxu0 0
    %106 = vmatpush1.bf16.msra.mxu0 0
    %107 = vmatprep.mubr.bf16.mxu0 0
    %108 = vmatmul.mubr.bf16.gmra.mrb[0].mxu0 %v73
    %v109 = vpop.f32.mrb[0].mxu0
    %v110 = vadd.f32 0.0, %v109
    %v111 = vpop.f32.mrb[0].mxu0
    %v112 = vpop.f32.mrb[0].mxu0
    %v113 = vadd.f32 0.0, %v112
    %v114 = vpop.f32.mrb[0].mxu0
    %115 = vdwg.mxu0
    %v116 = vadd.f32 %v50, %v110
    %v117 = vadd.f32 %v51, %v113
    %118 = vst [vmem:[#allocation2] sm:$0xff] %v116
    %119 = vst [vmem:[#allocation2 + $0x8] sm:$0xff] %v117
    // Predicated region
    $region26: #{tpu_custom_call.1} parent=1 // pred_check
      %p120 = pneg %p44
    $region27: #{tpu_custom_call.1} parent=1 // pred_check_branch
      %122 = sbr.rel (%p120) target = $region29
    $region28: #{tpu_custom_call.1} parent=1 // pred_region
      %v123 = vld [vmem:[#allocation2] sm:$0xff]
      %v124 = vld [vmem:[#allocation2 + $0x8] sm:$0xff]
      %v125 = vld [vmem:[%s2] sm:$0x1]
      %v127 = vlaneseq
      %v128 = vshrl.u32 %v127, 7
      %v129 = vsub.s32 0, %v128
      %v130 = vrot.slane %v125, %v129
      %v132 = vadd.f32 %v123, %v130
      %v133 = vadd.f32 %v124, %v130
      %v134 = vmax.f32 %v132, 0.0
      %v135 = vmax.f32 %v133, 0.0
      %136 = vst [vmem:[#allocation8] sm:$0xff] %v134
      %137 = vst [vmem:[#allocation8 + $0x8] sm:$0xff] %v135
    $region29: #{tpu_custom_call.1} parent=1 // pred_fallthru
      _
    // Predicated region
    $region30: #{tpu_custom_call.1} parent=1 // pred_check
      _
    $region31: #{tpu_custom_call.1} parent=1 // pred_check_branch
      %139 = sbr.rel (0) target = $region33
    $region32: #{tpu_custom_call.1} parent=1 // pred_region
      %s141 = ssub.s32 256, 256
      %142 = vsyncadd [#allocation5], %s141
      %s143 = sshll.u32 [#allocation8], 4
      %s144 = int_to_ptr.vmem [resolvable:$true] %s143
      %149 = dma.vmem_to_hbm [thread:$0]  %s144, 256, %s3, [#allocation5], 128, 128, 8
    $region33: #{tpu_custom_call.1} parent=1 // pred_fallthru
      _
    // Predicated region
    $region34: #{tpu_custom_call.1} parent=1 // pred_check
      _
    $region35: #{tpu_custom_call.1} parent=1 // pred_check_branch
      %151 = sbr.rel (0) target = $region37
    $region36: #{tpu_custom_call.1} parent=1 // pred_region
      %152 = dma.done [#allocation5], 256
    $region37: #{tpu_custom_call.1} parent=1 // pred_fallthru
      _
    %153 = vsyncpa [#allocation4], 1
    %154 = vsyncpa [#allocation7], 1
    %155 = vsyncpa [#allocation5], 1

</llo_original>
